<compile_context>
chip_gen: v7x
topology: tpu7x:2x2x1
jax: 0.10.0
libtpu: 0.0.40
codegen_flags: <defaults>
</compile_context>

<pallas_src>
import math

import jax
import jax.numpy as jnp
from jax import lax
from jax.experimental import pallas as pl
from jax.experimental.pallas import tpu as pltpu

MZ_MAX = 2000.0          # mz_max_value
PROB_THRESHOLD = 1e-4    # prob_threshold
LN_EPS = 1e-5            # torch LayerNorm default eps
LANE = 128
SUBLANE = 8
NEG_INF = -1e30          # plain python float -> never a captured jnp constant


def _vmem_limit_bytes():
    # generation-aware VMEM budget (v5e/v6e: 128 MiB phys, v7x: 64 MiB phys)
    try:
        cap = int(pltpu.get_tpu_info().vmem_capacity_bytes)
    except Exception:
        cap = 128 * 1024 * 1024
    return int(max(32 * 1024 * 1024,
                   min(cap - 16 * 1024 * 1024, 100 * 1024 * 1024)))


VMEM_LIMIT = _vmem_limit_bytes()
LINEAR_TM = 512 if VMEM_LIMIT >= 64 * 1024 * 1024 else 256


def _round_up(n, m):
    return ((n + m - 1) // m) * m


def _pad2(a, rows, cols):
    a = jnp.asarray(a, jnp.float32)
    if a.ndim == 1:
        a = a.reshape(1, -1)
    return jnp.pad(a, ((0, rows - a.shape[0]), (0, cols - a.shape[1])))


def _gelu(x):
    # exact (erf-based) GELU, matching torch.nn.GELU() default
    return 0.5 * x * (1.0 + lax.erf(x * (1.0 / math.sqrt(2.0))))


def _ln_padded(x, g, b, n_valid):
    # LayerNorm over the last axis where only the first `n_valid` lanes carry
    # data and all padded lanes are exactly zero.  Two-pass (x-mu)^2 variance
    # with a lane mask (avoids E[x^2]-mu^2 cancellation and padded-lane mu^2
    # contamination).  Padded gamma/beta are zero -> padded lanes stay zero.
    inv_n = 1.0 / float(n_valid)
    mu = jnp.sum(x, axis=-1, keepdims=True) * inv_n
    lane_ok = lax.broadcasted_iota(jnp.int32, x.shape, x.ndim - 1) < n_valid
    centered = jnp.where(lane_ok, x - mu, 0.0)
    var = jnp.sum(centered * centered, axis=-1, keepdims=True) * inv_n
    return centered * lax.rsqrt(var + LN_EPS) * g + b


# --------------------------- tiled linear ------------------------------------

def _make_linear_kernel(act):
    def kernel(x_ref, w_ref, b_ref, o_ref):
        y = (jnp.dot(x_ref[...].astype(jnp.bfloat16), w_ref[...],
                     preferred_element_type=jnp.float32) + b_ref[...])
        if act is not None:
            y = act(y)
        o_ref[...] = y
    return kernel


def pallas_linear(x, w_bf16, b_row, *, act=None, tm=None):
    """x:[M,K] bf16/f32 @ w:[K,N] bf16 + b:[1,N] -> [M,N] f32, tiled rows."""
    if tm is None:
        tm = LINEAR_TM
    M, K = x.shape
    N = w_bf16.shape[1]
    MP = _round_up(M, SUBLANE)
    tm = MP if MP <= tm else tm
    MP = _round_up(MP, tm)
    xp = jnp.pad(x, ((0, MP - M), (0, 0)))
    out = pl.pallas_call(
        _make_linear_kernel(act),
        grid=(MP // tm,),
        in_specs=[pl.BlockSpec((tm, K), lambda i: (i, 0)),
                  pl.BlockSpec((K, N), lambda i: (0, 0)),
                  pl.BlockSpec((1, N), lambda i: (0, 0))],
        out_specs=pl.BlockSpec((tm, N), lambda i: (i, 0)),
        out_shape=jax.ShapeDtypeStruct((MP, N), jnp.float32),
        compiler_params=pltpu.CompilerParams(
            dimension_semantics=("parallel",),
            vmem_limit_bytes=VMEM_LIMIT),
    )(xp, w_bf16, b_row)
    return out[:M]


# --------------------------- SignNet stand-in --------------------------------

def _signnet_kernel(nf_ref, ev_ref, en_ref, wphi_ref, bphi_ref,
                    wra_ref, wrb_ref, brho_ref, o_ref):
    # TODO(synk): SignNet class definition not provided; sign-invariant
    # phi/rho MLP stand-in (phi(v) + phi(-v) -> rho), fused with the
    # node_features add so x0 = node_features + signnet(...) in one kernel.
    bf = jnp.bfloat16
    ev = ev_ref[...].astype(bf)
    # dot(-ev, w) == -dot(ev, w): compute the MXU matmul once and reuse.
    d = jnp.dot(ev, wphi_ref[...], preferred_element_type=jnp.float32)
    bphi = bphi_ref[...]
    s = (_gelu(d + bphi) + _gelu(-d + bphi)).astype(bf)
    x_eig = (jnp.dot(s, wra_ref[...], preferred_element_type=jnp.float32)
             + jnp.dot(en_ref[...].astype(bf), wrb_ref[...],
                       preferred_element_type=jnp.float32)
             + brho_ref[...])
    o_ref[...] = nf_ref[...] + x_eig


# --------------------------- fused GINE encoder stack ------------------------

def _make_encoder_kernel(h_real):
    bf = jnp.bfloat16

    def kernel(x0_ref, e0_ref, src_ref, dst_ref, scale_ref,
               rw1_ref, rb1_ref, rw2_ref, rb2_ref,
               ew1a_ref, ew1b_ref, ew1c_ref, eb1_ref, ew2_ref, eb2_ref,
               gng_ref, gnb_ref,
               x_ref, e_ref):
        layer = pl.program_id(0)

        @pl.when(layer == 0)
        def _():
            # TODO(synk): at production N/E on v7x, initialize the x/e HBM
            # outputs outside the kernel (input_output_aliases) so x0/e0 are
            # not VMEM-resident for the whole depth grid.
            x_ref[...] = x0_ref[...]
            e_ref[...] = e0_ref[...]

        x = x_ref[...]
        e = e_ref[...]
        src = src_ref[...]          # [EP, NP] bf16 one-hot (exact in bf16)
        dst = dst_ref[...]          # [EP, NP] bf16 one-hot

        # GINEConv: msg = relu(x[src] + e); agg = scatter_add(msg, dst)
        # TODO(synk): for large graphs (E*N beyond ~2k*2k) replace the one-hot
        # matmuls with SMEM edge_index (scalar prefetch) + manual DMA gather.
        xs = jnp.dot(src, x.astype(bf), preferred_element_type=jnp.float32)
        msg = jnp.maximum(xs + e, 0.0)
        # dst^T @ msg without materializing the transpose (MXU-native).
        agg = lax.dot_general(dst, msg.astype(bf),
                              dimension_numbers=(((0,), (0,)), ((), ())),
                              preferred_element_type=jnp.float32)
        h = scale_ref[0] * x + agg                        # scale = 1 + eps

        # TODO(synk): GINEConv's nn=ResBlock definition not provided;
        # residual 2-layer GELU MLP stand-in (dropout = identity, eval mode).
        r = _gelu(jnp.dot(h.astype(bf), rw1_ref[0],
                          preferred_element_type=jnp.float32) + rb1_ref[0])
        r = (jnp.dot(r.astype(bf), rw2_ref[0],
                     preferred_element_type=jnp.float32) + rb2_ref[0])
        x_new = h + r
        x_ref[...] = x_new
        x_new_b = x_new.astype(bf)

        # edge update: Linear(3H->H) o SiLU o Dropout(id) o Linear(H->H) o Norm
        # (the 3H concat is folded into three H x H matmuls: e, x[src], x[dst])
        xs_n = jnp.dot(src, x_new_b, preferred_element_type=jnp.float32)
        xd_n = jnp.dot(dst, x_new_b, preferred_element_type=jnp.float32)
        eu = (jnp.dot(e.astype(bf), ew1a_ref[0],
                      preferred_element_type=jnp.float32)
              + jnp.dot(xs_n.astype(bf), ew1b_ref[0],
                        preferred_element_type=jnp.float32)
              + jnp.dot(xd_n.astype(bf), ew1c_ref[0],
                        preferred_element_type=jnp.float32)
              + eb1_ref[0])
        eu = eu * jax.nn.sigmoid(eu)                      # SiLU (f32)
        eu = (jnp.dot(eu.astype(bf), ew2_ref[0],
                      preferred_element_type=jnp.float32) + eb2_ref[0])
        # TODO(synk): GraphNorm definition not provided; LayerNorm stand-in.
        e_ref[...] = _ln_padded(eu, gng_ref[0], gnb_ref[0], h_real)

    return kernel


def pallas_encoder(x0, e0, src_mat, dst_mat, pk):
    NP, HP = x0.shape
    EP = e0.shape[0]
    depth = pk["enc_rw1"].shape[0]

    full2 = lambda shape: pl.BlockSpec(shape, lambda l: (0, 0))
    perl_w = pl.BlockSpec((1, HP, HP), lambda l: (l, 0, 0))
    perl_b = pl.BlockSpec((1, 1, HP), lambda l: (l, 0, 0))

    # TODO(synk): on v7x add a leading "parallel" row-tile axis (or split
    # independent graphs) so the second TensorCore is used.
    x_out, _ = pl.pallas_call(
        _make_encoder_kernel(pk["H"]),
        grid=(depth,),
        in_specs=[full2((NP, HP)), full2((EP, HP)),
                  full2((EP, NP)), full2((EP, NP)),
                  perl_b,                                    # 1 + eps
                  perl_w, perl_b, perl_w, perl_b,            # ResBlock
                  perl_w, perl_w, perl_w, perl_b,            # edge Linear(3H->H)
                  perl_w, perl_b,                            # edge Linear(H->H)
                  perl_b, perl_b],                           # norm gamma/beta
        out_specs=(full2((NP, HP)), full2((EP, HP))),
        out_shape=(jax.ShapeDtypeStruct((NP, HP), jnp.float32),
                   jax.ShapeDtypeStruct((EP, HP), jnp.float32)),
        compiler_params=pltpu.CompilerParams(
            dimension_semantics=("arbitrary",),
            vmem_limit_bytes=VMEM_LIMIT),
    )(x0, e0, src_mat, dst_mat,
      pk["enc_scale"],
      pk["enc_rw1"], pk["enc_rb1"], pk["enc_rw2"], pk["enc_rb2"],
      pk["enc_ew1a"], pk["enc_ew1b"], pk["enc_ew1c"], pk["enc_eb1"],
      pk["enc_ew2"], pk["enc_eb2"], pk["enc_gng"], pk["enc_gnb"])
    return x_out


# --------------------------- fused pooling + output head ---------------------

def _make_head_kernel(h_real, f_real, n_real):
    bf = jnp.bfloat16

    def kernel(x_ref, seg_ref, wq_ref, bq_ref,
               sup_ref, wsup_ref, bsup_ref, gs_ref, bs_ref,
               w1_ref, b1_ref, w2_ref, b2_ref, gm_ref, bm_ref,
               wmz_ref, bmz_ref, wp_ref, bp_ref,
               mz_ref, prob_ref):
        x = x_ref[...]                                      # [NP, HP] f32
        npad = x.shape[0]

        # attention pooling: score via VPU row-reduce (not a [H,1] MXU matmul);
        # softmax over ALL nodes in the batch (dim=0) as in the torch reference.
        scores = jnp.sum(x * wq_ref[...], axis=-1, keepdims=True) + bq_ref[...]
        rmask = lax.broadcasted_iota(jnp.int32, (npad, 1), 0) < n_real
        scores = jnp.where(rmask, scores, NEG_INF)
        ex = jnp.exp(scores - jnp.max(scores)) * rmask.astype(jnp.float32)
        attn = ex * pl.reciprocal(jnp.sum(ex, keepdims=True), approx=True)
        pooled = jnp.dot(seg_ref[...], (x * attn).astype(bf),
                         preferred_element_type=jnp.float32)        # [B, HP]

        # supplementary branch: Linear -> Dropout(id) -> LayerNorm -> GELU
        sup = (jnp.dot(sup_ref[...].astype(bf), wsup_ref[...],
                       preferred_element_type=jnp.float32) + bsup_ref[...])
        sup = _gelu(_ln_padded(sup, gs_ref[...], bs_ref[...], h_real))
        combined = pooled + sup

        # residual MLP head
        y = _gelu(jnp.dot(combined.astype(bf), w1_ref[...],
                          preferred_element_type=jnp.float32) + b1_ref[...])
        y = (jnp.dot(y.astype(bf), w2_ref[...],
                     preferred_element_type=jnp.float32) + b2_ref[...])
        y = _ln_padded(combined + y, gm_ref[...], bm_ref[...], h_real)
        yb = y.astype(bf)

        # m/z head: ReLU then clamp(max=mz_max_value)
        # TODO(synk): for production F (thousands) tile the fragment axis with
        # a "parallel" grid + two-pass softmax instead of one full-F block.
        mz = (jnp.dot(yb, wmz_ref[...],
                      preferred_element_type=jnp.float32) + bmz_ref[...])
        mz = jnp.minimum(jnp.maximum(mz, 0.0), MZ_MAX)

        # probability head: masked softmax over real fragments (exact division
        # so threshold decisions match the torch reference), threshold, renorm.
        logits = (jnp.dot(yb, wp_ref[...],
                          preferred_element_type=jnp.float32) + bp_ref[...])
        lmask = lax.broadcasted_iota(jnp.int32, logits.shape, 1) < f_real
        lmaskf = lmask.astype(jnp.float32)
        logits = jnp.where(lmask, logits, NEG_INF)
        pe = jnp.exp(logits - jnp.max(logits, axis=1, keepdims=True)) * lmaskf
        probs = pe / jnp.sum(pe, axis=1, keepdims=True)
        tmask = (probs > PROB_THRESHOLD).astype(jnp.float32)
        probs = probs * tmask
        probs = probs / (jnp.sum(probs, axis=1, keepdims=True) + 1e-10)

        mz_ref[...] = mz * tmask
        prob_ref[...] = probs

    return kernel


def pallas_head(x, seg, sup_p, pk, n_real):
    B = seg.shape[0]
    NP, HP = x.shape
    FP = pk["w_mz"].shape[1]
    SP = pk["w_sup"].shape[0]
    flops = 2 * (NP * HP + B * NP * HP + B * SP * HP
                 + 2 * B * HP * HP + 2 * B * HP * FP)
    bytes_accessed = (4 * (NP * HP + 2 * B * FP + 12 * HP + 2 * FP)
                      + 2 * (B * NP + 2 * HP * HP + 2 * HP * FP + SP * HP))
    mz, probs = pl.pallas_call(
        _make_head_kernel(pk["H"], pk["F"], n_real),
        out_shape=(jax.ShapeDtypeStruct((B, FP), jnp.float32),
                   jax.ShapeDtypeStruct((B, FP), jnp.float32)),
        compiler_params=pltpu.CompilerParams(vmem_limit_bytes=VMEM_LIMIT),
        cost_estimate=pl.CostEstimate(
            flops=int(flops),
            transcendentals=int(NP + 3 * B * HP + B * FP),
            bytes_accessed=int(bytes_accessed)),
    )(x, seg, pk["w_q"], pk["b_q"],
      sup_p, pk["w_sup"], pk["b_sup"], pk["g_sup"], pk["be_sup"],
      pk["w_fc1"], pk["b_fc1"], pk["w_fc2"], pk["b_fc2"],
      pk["g_mlp"], pk["be_mlp"],
      pk["w_mz"], pk["b_mz"], pk["w_prob"], pk["b_prob"])
    return mz, probs


# --------------------------- parameters --------------------------------------

def init_params(key, *, vocab, H, S, F, num_eigs, eig_dim, encoder_depth):
    def nxt():
        nonlocal key
        key, sub = jax.random.split(key)
        return sub

    def lin(k_in, k_out):
        w = jax.random.normal(nxt(), (k_in, k_out), jnp.float32) / math.sqrt(k_in)
        return w, jnp.zeros((k_out,), jnp.float32)

    p = {}
    p["emb"] = jax.random.normal(nxt(), (vocab, H), jnp.float32) * 0.02
    p["w_enc"], p["b_enc"] = lin(H, H)
    p["w_phi"], p["b_phi"] = lin(num_eigs, eig_dim)
    p["w_rho"], p["b_rho"] = lin(eig_dim + num_eigs, H)
    p["w_q"], p["b_q"] = lin(H, 1)
    p["w_sup"], p["b_sup"] = lin(S, H)
    p["g_sup"] = jnp.ones((H,), jnp.float32)
    p["be_sup"] = jnp.zeros((H,), jnp.float32)
    p["w_fc1"], p["b_fc1"] = lin(H, H)
    p["w_fc2"], p["b_fc2"] = lin(H, H)
    p["g_mlp"] = jnp.ones((H,), jnp.float32)
    p["be_mlp"] = jnp.zeros((H,), jnp.float32)
    p["w_mz"], p["b_mz"] = lin(H, F)
    p["w_prob"], p["b_prob"] = lin(H, F)

    enc = []
    for _ in range(encoder_depth):
        layer = {"eps": 0.0}            # GINEConv(train_eps=True, eps=0) init
        layer["res_w1"], layer["res_b1"] = lin(H, H)
        layer["res_w2"], layer["res_b2"] = lin(H, H)
        layer["eu_w1"], layer["eu_b1"] = lin(3 * H, H)
        layer["eu_w2"], layer["eu_b2"] = lin(H, H)
        layer["gn_g"] = jnp.ones((H,), jnp.float32)
        layer["gn_b"] = jnp.zeros((H,), jnp.float32)
        enc.append(layer)
    p["encoder"] = enc
    return p


def pack_params(p, *, H, S, F, num_eigs, eig_dim):
    """Pad feature dims to lane multiples, cast MXU weights to bf16, and stack
    per-layer encoder weights for the fused layer-grid kernel."""
    HP, FP = _round_up(H, LANE), _round_up(F, LANE)
    SP, NEP, EDP = (_round_up(S, LANE), _round_up(num_eigs, LANE),
                    _round_up(eig_dim, LANE))
    bf = jnp.bfloat16

    def w2(w, r, c):
        return _pad2(w, r, c).astype(bf)

    def brow(b, c):
        return _pad2(b, 1, c)

    pk = {"H": H, "F": F, "HP": HP, "FP": FP, "SP": SP, "NEP": NEP}
    pk["emb"] = _pad2(p["emb"], p["emb"].shape[0], HP).astype(bf)   # bf16 HBM
    pk["w_enc"], pk["b_enc"] = w2(p["w_enc"], HP, HP), brow(p["b_enc"], HP)
    pk["w_phi"], pk["b_phi"] = w2(p["w_phi"], NEP, EDP), brow(p["b_phi"], EDP)
    pk["w_rho_a"] = w2(p["w_rho"][:eig_dim], EDP, HP)
    pk["w_rho_b"] = w2(p["w_rho"][eig_dim:], NEP, HP)
    pk["b_rho"] = brow(p["b_rho"], HP)
    pk["w_q"] = _pad2(p["w_q"].T, 1, HP)                 # f32 row for VPU reduce
    pk["b_q"] = p["b_q"].reshape(1, 1)
    pk["w_sup"], pk["b_sup"] = w2(p["w_sup"], SP, HP), brow(p["b_sup"], HP)
    pk["g_sup"], pk["be_sup"] = brow(p["g_sup"], HP), brow(p["be_sup"], HP)
    pk["w_fc1"], pk["b_fc1"] = w2(p["w_fc1"], HP, HP), brow(p["b_fc1"], HP)
    pk["w_fc2"], pk["b_fc2"] = w2(p["w_fc2"], HP, HP), brow(p["b_fc2"], HP)
    pk["g_mlp"], pk["be_mlp"] = brow(p["g_mlp"], HP), brow(p["be_mlp"], HP)
    pk["w_mz"], pk["b_mz"] = w2(p["w_mz"], HP, FP), brow(p["b_mz"], FP)
    pk["w_prob"], pk["b_prob"] = w2(p["w_prob"], HP, FP), brow(p["b_prob"], FP)

    enc = p["encoder"]
    st = lambda mk: jnp.stack([mk(l) for l in enc], axis=0)
    pk["enc_scale"] = st(lambda l: jnp.full((1, HP), 1.0 + l["eps"], jnp.float32))
    pk["enc_rw1"] = st(lambda l: w2(l["res_w1"], HP, HP))
    pk["enc_rb1"] = st(lambda l: brow(l["res_b1"], HP))
    pk["enc_rw2"] = st(lambda l: w2(l["res_w2"], HP, HP))
    pk["enc_rb2"] = st(lambda l: brow(l["res_b2"], HP))
    pk["enc_ew1a"] = st(lambda l: w2(l["eu_w1"][:H], HP, HP))
    pk["enc_ew1b"] = st(lambda l: w2(l["eu_w1"][H:2 * H], HP, HP))
    pk["enc_ew1c"] = st(lambda l: w2(l["eu_w1"][2 * H:], HP, HP))
    pk["enc_eb1"] = st(lambda l: brow(l["eu_b1"], HP))
    pk["enc_ew2"] = st(lambda l: w2(l["eu_w2"], HP, HP))
    pk["enc_eb2"] = st(lambda l: brow(l["eu_b2"], HP))
    pk["enc_gng"] = st(lambda l: brow(l["gn_g"], HP))
    pk["enc_gnb"] = st(lambda l: brow(l["gn_b"], HP))
    return pk


# --------------------------- forward pass ------------------------------------

def forward(pk, input_ids, attention_mask, supplementary_data,
            eigenvecs, eigvals, edge_index, num_atoms=10, num_bonds=9):
    del attention_mask  # stub encoder ignores it
    B, L = input_ids.shape
    HP, FP, SP, NEP = pk["HP"], pk["FP"], pk["SP"], pk["NEP"]
    F = pk["F"]

    # TODO(synk): external pretrained ChemBERTa transformer replaced by a
    # deterministic embedding table + one tiled Pallas linear (+tanh).
    tok = pk["emb"][input_ids].reshape(B * L, HP)            # bf16 activations
    tok = pallas_linear(tok, pk["w_enc"], pk["b_enc"], act=jnp.tanh)
    tok = tok.reshape(B, L, HP)

    # token -> atom/bond accumulation (token_to_atom = t % num_atoms, etc.)
    t_idx = jnp.arange(L)
    atom_map = (t_idx[None, :] % num_atoms
                == jnp.arange(num_atoms)[:, None]).astype(jnp.float32)
    bond_map = (t_idx[None, :] % num_bonds
                == jnp.arange(num_bonds)[:, None]).astype(jnp.float32)
    node_feat = jnp.einsum("al,blh->bah", atom_map, tok).reshape(B * num_atoms, HP)
    edge_feat = jnp.einsum("el,blh->beh", bond_map, tok).reshape(B * num_bonds, HP)

    N = B * num_atoms
    E = edge_index.shape[1]
    NP = _round_up(N, LANE)             # NP is the lane dim of src/dst/seg
    EP = _round_up(max(E, B * num_bonds), SUBLANE)
    batch = jnp.repeat(jnp.arange(B), num_atoms)

    node_feat = jnp.pad(node_feat, ((0, NP - N), (0, 0)))
    edge_feat = jnp.pad(edge_feat, ((0, EP - B * num_bonds), (0, 0)))
    ev_p = _pad2(eigenvecs, NP, NEP)
    en_p = _pad2(eigvals[batch], NP, NEP)

    # SignNet stand-in fused with the node_features add
    x0 = pl.pallas_call(
        _signnet_kernel,
        out_shape=jax.ShapeDtypeStruct((NP, HP), jnp.float32),
        compiler_params=pltpu.CompilerParams(vmem_limit_bytes=VMEM_LIMIT),
    )(node_feat, ev_p, en_p, pk["w_phi"], pk["b_phi"],
      pk["w_rho_a"], pk["w_rho_b"], pk["b_rho"])

    # bf16 one-hot gather / scatter matrices (0/1 are exact in bf16; halves
    # HBM + VMEM footprint and uses the bf16-native MXU path).
    src, dst = edge_index[0], edge_index[1]
    eids = jnp.arange(E)
    src_mat = jnp.zeros((EP, NP), jnp.bfloat16).at[eids, src].set(1.0)
    dst_mat = jnp.zeros((EP, NP), jnp.bfloat16).at[eids, dst].set(1.0)

    # fused encoder stack (one pallas_call, grid over layers)
    x = pallas_encoder(x0, edge_feat, src_mat, dst_mat, pk)

    # fused attention pooling + supplementary + MLP + mz/prob heads
    seg = jnp.zeros((B, NP), jnp.bfloat16).at[batch, jnp.arange(N)].set(1.0)
    sup_p = _pad2(supplementary_data, B, SP)
    mz, probs = pallas_head(x, seg, sup_p, pk, n_real=N)

    return jnp.stack([mz[:, :F], probs[:, :F]], axis=-1)    # [B, max_frag, 2]


# --------------------------- demo --------------------------------------------

if __name__ == "__main__":
    B, L, H, S, F = 2, 16, 32, 8, 16       # batch, seq, hidden, supp_dim, max_fragments
    num_eigs, eig_dim = 8, 32
    encoder_depth = 2
    num_atoms, num_bonds = 10, 9
    vocab = 64

    key = jax.random.PRNGKey(0)
    kp, k1, k2, k3, k4 = jax.random.split(key, 5)
    params = init_params(kp, vocab=vocab, H=H, S=S, F=F,
                         num_eigs=num_eigs, eig_dim=eig_dim,
                         encoder_depth=encoder_depth)
    packed = pack_params(params, H=H, S=S, F=F,
                         num_eigs=num_eigs, eig_dim=eig_dim)

    input_ids = jax.random.randint(k1, (B, L), 0, vocab)
    attention_mask = jnp.ones((B, L), dtype=jnp.int32)
    supplementary_data = jax.random.normal(k2, (B, S), jnp.float32)
    eigenvecs = jax.random.normal(k3, (B * num_atoms, num_eigs), jnp.float32)
    eigvals = jax.random.normal(k4, (B, num_eigs), jnp.float32)

    src, dst = [], []
    for b in range(B):
        for kk in range(num_bonds):
            src.append(b * num_atoms + kk)
            dst.append(b * num_atoms + kk + 1)
    edge_index = jnp.array([src, dst], dtype=jnp.int32)

    out = forward(packed, input_ids, attention_mask, supplementary_data,
                  eigenvecs, eigvals, edge_index,
                  num_atoms=num_atoms, num_bonds=num_bonds)
    out = jax.block_until_ready(out)
    assert out.shape == (B, F, 2)
    assert bool(jnp.all(jnp.isfinite(out)))
    prob_row_sums = jnp.sum(out[..., 1], axis=1)
    assert bool(jnp.all(jnp.abs(prob_row_sums - 1.0) < 1e-2))
    print("KERNEL_OK")
</pallas_src>

<mosaic_0001>
module attributes {stable_mosaic.version = 11 : i64} {
  func.func @kernel(%arg0: i32, %arg1: memref<32x128xbf16, #tpu.memory_space<vmem>>, %arg2: memref<128x128xbf16, #tpu.memory_space<vmem>>, %arg3: memref<1x128xf32, #tpu.memory_space<vmem>>, %arg4: memref<32x128xf32, #tpu.memory_space<vmem>>) attributes {dimension_semantics = [#tpu.dimension_semantics<parallel>], iteration_bounds = array<i64: 1>, scalar_prefetch = 0 : i64, scratch_operands = 0 : i64, tpu.core_type = #tpu.core_type<tc>, window_params = [{transform_indices = @transform_0, window_bounds = array<i64: 32, 128>}, {pipeline_mode = #tpu.pipeline_mode<synchronous>, transform_indices = @transform_1, window_bounds = array<i64: 128, 128>}, {pipeline_mode = #tpu.pipeline_mode<synchronous>, transform_indices = @transform_2, window_bounds = array<i64: 1, 128>}, {transform_indices = @transform_3, window_bounds = array<i64: 32, 128>}]} {
    %c0 = arith.constant 0 : index
    %c0_0 = arith.constant 0 : index
    %0 = vector.load %arg1[%c0, %c0_0] : memref<32x128xbf16, #tpu.memory_space<vmem>>, vector<32x128xbf16>
    %c0_1 = arith.constant 0 : index
    %c0_2 = arith.constant 0 : index
    %1 = vector.load %arg2[%c0_1, %c0_2] : memref<128x128xbf16, #tpu.memory_space<vmem>>, vector<128x128xbf16>
    %cst = arith.constant dense<0.000000e+00> : vector<32x128xf32>
    %2 = tpu.matmul %0, %1, %cst {dimension_numbers = #tpu.dot_dimension_numbers<[1], [0], [0], [1], [0, 0, 1, 1], [], []>} : vector<32x128xbf16>, vector<128x128xbf16>, vector<32x128xf32> -> vector<32x128xf32>
    %c0_3 = arith.constant 0 : index
    %c0_4 = arith.constant 0 : index
    %3 = vector.load %arg3[%c0_3, %c0_4] : memref<1x128xf32, #tpu.memory_space<vmem>>, vector<1x128xf32>
    %4 = vector.broadcast %3 : vector<1x128xf32> to vector<32x128xf32>
    %5 = arith.addf %2, %4 : vector<32x128xf32>
    %6 = math.tanh %5 : vector<32x128xf32>
    %c0_5 = arith.constant 0 : index
    %c0_6 = arith.constant 0 : index
    %7 = vector.load %arg4[%c0_5, %c0_6] : memref<32x128xf32, #tpu.memory_space<vmem>>, vector<32x128xf32>
    tpu.vector_store %arg4[%c0_5, %c0_6], %6 {strides = array<i32>} : memref<32x128xf32, #tpu.memory_space<vmem>>, vector<32x128xf32>,
    return
  }
  func.func @transform_0(%arg0: i32) -> (i32, i32) {
    %c0_i32 = arith.constant 0 : i32
    %c0_i32_0 = arith.constant 0 : i32
    return %arg0, %c0_i32 : i32, i32
  }
  func.func @transform_1(%arg0: i32) -> (i32, i32) {
    %c0_i32 = arith.constant 0 : i32
    %c0_i32_0 = arith.constant 0 : i32
    %c0_i32_1 = arith.constant 0 : i32
    return %c0_i32, %c0_i32_0 : i32, i32
  }
  func.func @transform_2(%arg0: i32) -> (i32, i32) {
    %c0_i32 = arith.constant 0 : i32
    %c0_i32_0 = arith.constant 0 : i32
    %c0_i32_1 = arith.constant 0 : i32
    return %c0_i32, %c0_i32_0 : i32, i32
  }
  func.func @transform_3(%arg0: i32) -> (i32, i32) {
    %c0_i32 = arith.constant 0 : i32
    %c0_i32_0 = arith.constant 0 : i32
    return %arg0, %c0_i32 : i32, i32
  }
}

</mosaic_0001>

<llo_original>
// kernel: tpu_custom_call.1
$region0: #{tpu_custom_call.1}
  #allocation0 [shape = 'u32[]', space=smem, size = 0x4, offset = 0x4, fixed_abs, tag = 'smem constant byte address 0x4 - core index']
  #allocation1 [shape = 'u32[144,128]{1,0:T(1,128)}', space=vmem, size = 0x12000, scoped, tag = 'internal scratch']
  %s0 = inlined_call_operand.hbm [shape: bf16[32,128], index: 0, kind: input, shape index: {}]
  %s1 = inlined_call_operand.hbm [shape: bf16[128,128], index: 1, kind: input, shape index: {}]
  %s2 = inlined_call_operand.hbm [shape: f32[1,128], index: 2, kind: input, shape index: {}]
  %s3 = inlined_call_operand.hbm [shape: f32[32,128], index: 3, kind: output, shape index: {}]
  %s4 = sld [smem:[#allocation0]]
  $region34: #{tpu_custom_call.1} parent=0
    _
  %s6 = ssub.s32 1, %s4
  %s7 = scalar_select 0, %s6, %s4
  $region1: #{tpu_custom_call.1} parent=0
    #allocation2 [shape = 'u8[8192]{0}', space=vmem, size = 0x2000, scoped, tag = 'input window, operand 0, single buffered']
    #allocation3 [shape = 's32[1]{0}', space=sflag, size = 0x4, scoped, tag = 'scoped memory for tpu_custom_call.1']
    #allocation4 [shape = 's32[1]{0}', space=sflag, size = 0x4, scoped, tag = 'scoped memory for tpu_custom_call.1']
    #allocation5 [shape = 'u8[32768]{0}', space=vmem, size = 0x8000, scoped, tag = 'input window, operand 1, single buffered']
    #allocation6 [shape = 's32[1]{0}', space=sflag, size = 0x4, scoped, tag = 'scoped memory for tpu_custom_call.1']
    #allocation7 [shape = 'u8[512]{0}', space=vmem, size = 0x400, scoped, tag = 'input window, operand 2, single buffered']
    #allocation8 [shape = 'u8[16384]{0}', space=vmem, size = 0x4000, scoped, tag = 'output window, operand 0, single buffered']
    %8 = vsyncpa [#allocation3], 0
    %9 = vsyncpa [#allocation6], 0
    %10 = vsyncpa [#allocation4], 0
    // Predicated region
    $region2: #{tpu_custom_call.1} parent=1 // pred_check
      _
    $region3: #{tpu_custom_call.1} parent=1 // pred_check_branch
      %12 = sbr.rel (0) target = $region5
    $region4: #{tpu_custom_call.1} parent=1 // pred_region
      %s14 = ssub.s32 256, 256
      %15 = vsyncadd [#allocation3], %s14
      %s16 = sshll.u32 [#allocation2], 4
      %s17 = int_to_ptr.vmem [resolvable:$true] %s16
      %22 = dma.hbm_to_vmem [thread:$0]  %s0, 256, %s17, [#allocation3], 64, 64, 4
    $region5: #{tpu_custom_call.1} parent=1 // pred_fallthru
      _
    // Predicated region
    $region6: #{tpu_custom_call.1} parent=1 // pred_check
      _
    $region7: #{tpu_custom_call.1} parent=1 // pred_check_branch
      %24 = sbr.rel (0) target = $region9
    $region8: #{tpu_custom_call.1} parent=1 // pred_region
      %s26 = ssub.s32 1024, 1024
      %27 = vsyncadd [#allocation6], %s26
      %s28 = sshll.u32 [#allocation5], 4
      %s29 = int_to_ptr.vmem [resolvable:$true] %s28
      %34 = dma.hbm_to_vmem [thread:$0]  %s1, 1024, %s29, [#allocation6], 64, 64, 4
    $region9: #{tpu_custom_call.1} parent=1 // pred_fallthru
      _
    // Predicated region
    $region10: #{tpu_custom_call.1} parent=1 // pred_check
      _
    $region11: #{tpu_custom_call.1} parent=1 // pred_check_branch
      %36 = sbr.rel (0) target = $region13
    $region12: #{tpu_custom_call.1} parent=1 // pred_region
      %s38 = ssub.s32 16, 16
      %39 = vsyncadd [#allocation6], %s38
      %s41 = sshll.u32 [#allocation7], 4
      %s42 = int_to_ptr.vmem [resolvable:$true] %s41
      %44 = dma.hbm_to_vmem [thread:$0]  %s2, 16, %s42, [#allocation6]
    $region13: #{tpu_custom_call.1} parent=1 // pred_fallthru
      _
    // Predicated region
    $region14: #{tpu_custom_call.1} parent=1 // pred_check
      _
    $region15: #{tpu_custom_call.1} parent=1 // pred_check_branch
      %46 = sbr.rel (0) target = $region17
    $region16: #{tpu_custom_call.1} parent=1 // pred_region
      %47 = dma.done [#allocation3], 256
    $region17: #{tpu_custom_call.1} parent=1 // pred_fallthru
      _
    // Predicated region
    $region18: #{tpu_custom_call.1} parent=1 // pred_check
      _
    $region19: #{tpu_custom_call.1} parent=1 // pred_check_branch
      %49 = sbr.rel (0) target = $region21
    $region20: #{tpu_custom_call.1} parent=1 // pred_region
      %50 = dma.done [#allocation6], 1024
    $region21: #{tpu_custom_call.1} parent=1 // pred_fallthru
      _
    // Predicated region
    $region22: #{tpu_custom_call.1} parent=1 // pred_check
      _
    $region23: #{tpu_custom_call.1} parent=1 // pred_check_branch
      %52 = sbr.rel (0) target = $region25
    $region24: #{tpu_custom_call.1} parent=1 // pred_region
      %53 = dma.done [#allocation6], 16
    $region25: #{tpu_custom_call.1} parent=1 // pred_fallthru
      _
    %v55 = vld [vmem:[#allocation2] sm:$0xf]
    %v56 = vld [vmem:[#allocation2 + $0x4] sm:$0xf]
    %v57 = vld [vmem:[#allocation2 + $0x8] sm:$0xf]
    %v58 = vld [vmem:[#allocation2 + $0xc] sm:$0xf]
    %v59 = vld [vmem:[#allocation5] sm:$0xf]
    %v60 = vld [vmem:[#allocation5 + $0x4] sm:$0xf]
    %v61 = vld [vmem:[#allocation5 + $0x8] sm:$0xf]
    %v62 = vld [vmem:[#allocation5 + $0xc] sm:$0xf]
    %v63 = vld [vmem:[#allocation5 + $0x10] sm:$0xf]
    %v64 = vld [vmem:[#allocation5 + $0x14] sm:$0xf]
    %v65 = vld [vmem:[#allocation5 + $0x18] sm:$0xf]
    %v66 = vld [vmem:[#allocation5 + $0x1c] sm:$0xf]
    %v67 = vld [vmem:[#allocation5 + $0x20] sm:$0xf]
    %v68 = vld [vmem:[#allocation5 + $0x24] sm:$0xf]
    %v69 = vld [vmem:[#allocation5 + $0x28] sm:$0xf]
    %v70 = vld [vmem:[#allocation5 + $0x2c] sm:$0xf]
    %v71 = vld [vmem:[#allocation5 + $0x30] sm:$0xf]
    %v72 = vld [vmem:[#allocation5 + $0x34] sm:$0xf]
    %v73 = vld [vmem:[#allocation5 + $0x38] sm:$0xf]
    %v74 = vld [vmem:[#allocation5 + $0x3c] sm:$0xf]
    %v75 = vld [vmem:[#allocation7] sm:$0x1]
    %v77 = vlaneseq
    %v78 = vshrl.u32 %v77, 7
    %v79 = vsub.s32 0, %v78
    %v80 = vrot.slane %v75, %v79
    %v86 = vunpack.c.l.b16 %v55
    %v87 = vunpack.c.l.b16 %v56
    %v88 = vunpack.c.l.b16 %v57
    %v89 = vunpack.c.l.b16 %v58
    %v90 = vpack.c.b16 %v87, %v86
    %v91 = vpack.c.b16 %v89, %v88
    %v110 = vunpack.c.l.b16 %v59
    %v111 = vunpack.c.l.b16 %v60
    %v112 = vunpack.c.l.b16 %v61
    %v113 = vunpack.c.l.b16 %v62
    %v114 = vunpack.c.l.b16 %v63
    %v115 = vunpack.c.l.b16 %v64
    %v116 = vunpack.c.l.b16 %v65
    %v117 = vunpack.c.l.b16 %v66
    %v118 = vunpack.c.l.b16 %v67
    %v119 = vunpack.c.l.b16 %v68
    %v120 = vunpack.c.l.b16 %v69
    %v121 = vunpack.c.l.b16 %v70
    %v122 = vunpack.c.l.b16 %v71
    %v123 = vunpack.c.l.b16 %v72
    %v124 = vunpack.c.l.b16 %v73
    %v125 = vunpack.c.l.b16 %v74
    %v126 = vpack.c.b16 %v111, %v110
    %v127 = vpack.c.b16 %v113, %v112
    %v128 = vpack.c.b16 %v115, %v114
    %v129 = vpack.c.b16 %v117, %v116
    %v130 = vpack.c.b16 %v119, %v118
    %v131 = vpack.c.b16 %v121, %v120
    %v132 = vpack.c.b16 %v123, %v122
    %v133 = vpack.c.b16 %v125, %v124
    %142 = vmatprep.subr.bf16.mxu0 0
    %143 = vmatpush1.bf16.msra.mxu0 %v126
    %144 = vmatprep.subr.bf16.mxu0 0
    %145 = vmatpush1.bf16.msra.mxu0 %v127
    %146 = vmatprep.subr.bf16.mxu0 0
    %147 = vmatpush1.bf16.msra.mxu0 %v128
    %148 = vmatprep.subr.bf16.mxu0 0
    %149 = vmatpush1.bf16.msra.mxu0 %v129
    %150 = vmatprep.subr.bf16.mxu0 0
    %151 = vmatpush1.bf16.msra.mxu0 %v130
    %152 = vmatprep.subr.bf16.mxu0 0
    %153 = vmatpush1.bf16.msra.mxu0 %v131
    %154 = vmatprep.subr.bf16.mxu0 0
    %155 = vmatpush1.bf16.msra.mxu0 %v132
    %156 = vmatprep.subr.bf16.mxu0 0
    %157 = vmatpush1.bf16.msra.mxu0 %v133
    %158 = vmatprep.subr.bf16.mxu0 0
    %159 = vmatpush1.bf16.msra.mxu0 0
    %160 = vmatprep.subr.bf16.mxu0 0
    %161 = vmatpush1.bf16.msra.mxu0 0
    %162 = vmatprep.subr.bf16.mxu0 0
    %163 = vmatpush1.bf16.msra.mxu0 0
    %164 = vmatprep.subr.bf16.mxu0 0
    %165 = vmatpush1.bf16.msra.mxu0 0
    %166 = vmatprep.subr.bf16.mxu0 0
    %167 = vmatpush1.bf16.msra.mxu0 0
    %168 = vmatprep.subr.bf16.mxu0 0
    %169 = vmatpush1.bf16.msra.mxu0 0
    %170 = vmatprep.subr.bf16.mxu0 0
    %171 = vmatpush1.bf16.msra.mxu0 0
    %172 = vmatprep.subr.bf16.mxu0 0
    %173 = vmatpush1.bf16.msra.mxu0 0
    %174 = vmatprep.mubr.bf16.mxu0 0
    %175 = vmatmul.mubr.bf16.gmra.mrb[0].mxu0 %v90
    %v176 = vpop.f32.mrb[0].mxu0
    %v177 = vadd.f32 %v80, %v176
    %v178 = vpop.f32.mrb[0].mxu0
    %v179 = vpop.f32.mrb[0].mxu0
    %v180 = vadd.f32 %v80, %v179
    %v181 = vpop.f32.mrb[0].mxu0
    %182 = vmatprep.mubr.bf16.mxu0 0
    %183 = vmatmul.mubr.bf16.gmra.mrb[0].mxu0 %v91
    %v184 = vpop.f32.mrb[0].mxu0
    %v185 = vadd.f32 %v80, %v184
    %v186 = vpop.f32.mrb[0].mxu0
    %v187 = vpop.f32.mrb[0].mxu0
    %v188 = vadd.f32 %v80, %v187
    %v189 = vpop.f32.mrb[0].mxu0
    %190 = vdwg.mxu0
    %v191 = vtanh.pop %v177
    %v192 = vtanh.pop %v180
    %v193 = vtanh.pop %v185
    %v194 = vtanh.pop %v188
    %195 = vst [vmem:[#allocation8] sm:$0xff] %v191
    %196 = vst [vmem:[#allocation8 + $0x8] sm:$0xff] %v192
    %197 = vst [vmem:[#allocation8 + $0x10] sm:$0xff] %v193
    %198 = vst [vmem:[#allocation8 + $0x18] sm:$0xff] %v194
    // Predicated region
    $region26: #{tpu_custom_call.1} parent=1 // pred_check
      _
    $region27: #{tpu_custom_call.1} parent=1 // pred_check_branch
      %200 = sbr.rel (0) target = $region29
    $region28: #{tpu_custom_call.1} parent=1 // pred_region
      %s202 = ssub.s32 512, 512
      %203 = vsyncadd [#allocation4], %s202
      %s204 = sshll.u32 [#allocation8], 4
      %s205 = int_to_ptr.vmem [resolvable:$true] %s204
      %210 = dma.vmem_to_hbm [thread:$0]  %s205, 512, %s3, [#allocation4], 128, 128, 8
    $region29: #{tpu_custom_call.1} parent=1 // pred_fallthru
      _
    // Predicated region
    $region30: #{tpu_custom_call.1} parent=1 // pred_check
      _
    $region31: #{tpu_custom_call.1} parent=1 // pred_check_branch
      %212 = sbr.rel (0) target = $region33
    $region32: #{tpu_custom_call.1} parent=1 // pred_region
      %213 = dma.done [#allocation4], 512
    $region33: #{tpu_custom_call.1} parent=1 // pred_fallthru
      _
    %214 = vsyncpa [#allocation3], 1
    %215 = vsyncpa [#allocation6], 1
    %216 = vsyncpa [#allocation4], 1

</llo_original>
